<compile_context>
chip_gen: v7x
topology: tpu7x:2x2x1
jax: 0.10.0
libtpu: 0.0.40
codegen_flags: <defaults>
</compile_context>

<pallas_src>
import jax
import jax.numpy as jnp
from jax.experimental import pallas as pl
from jax.experimental.pallas import tpu as pltpu


_LANE = 128
_SUBLANE = 8

# Per-array block-size targets.  Pipelining double-buffers each of the
# 1 input + 2 output blocks, so steady-state VMEM ~= 6 x block_bytes.
# 4 MiB target (8 MiB cap) => <= ~48 MiB, safe on v7x (64 MiB physical) and
# comfortable on v5e/v6e (128 MiB).
_TARGET_BLOCK_BYTES = 4 * 1024 * 1024
_MAX_BLOCK_BYTES = 8 * 1024 * 1024
_VMEM_LIMIT_BYTES = 48 * 1024 * 1024

# Channel-mix strategy: scalar*slab VPU adds up to here, MXU contraction
# beyond (a padded (C,C)@(C,TM) matmul is wasted systolic work at small C
# while the op stays HBM-bound).
_SMALL_C_MAX = 32


def _round_up(v, m):
    return (v + m - 1) // m * m


# ----------------------------------------------------------------------------
# Kernels
# ----------------------------------------------------------------------------
def _skip_small_c_kernel(skip_ref, w_ref, b_ref, x_ref, out_ref, latent_ref):
    # skip_ref  : SMEM (1,)        skip coefficient
    # w_ref     : SMEM (C*C,)      1x1-conv weight, row-major (out_ch, in_ch)
    # b_ref     : SMEM (C,)        bias per output channel
    # x_ref     : VMEM (C, RB, 128)  sublane-dense per-channel slabs
    # out_ref   : VMEM (C, RB, 128)  skip * x + latent
    # latent_ref: VMEM (C, RB, 128)  latent = conv1x1(x)
    skip = skip_ref[0]
    c = x_ref.shape[0]

    # Load each channel slab once; the channel mix is pure scalar-operand
    # vmul/vadd on dense (RB, 128) slabs (no sublane/lane broadcasts, no MXU).
    xs = [x_ref[i] for i in range(c)]
    for o in range(c):
        acc = xs[0] * w_ref[o * c + 0]
        for i in range(1, c):
            acc = acc + xs[i] * w_ref[o * c + i]
        acc = acc + b_ref[o]
        latent_ref[o] = acc.astype(latent_ref.dtype)
        out_ref[o] = (skip * xs[o] + acc).astype(out_ref.dtype)


def _skip_large_c_kernel(skip_ref, w_ref, b_ref, x_ref, out_ref, latent_ref):
    # skip_ref : SMEM (1,)     w_ref: VMEM (C, C)     b_ref: VMEM (C, 1)
    # x_ref / out_ref / latent_ref : VMEM (C, TM)
    skip = skip_ref[0]
    x = x_ref[...]
    acc = jnp.dot(w_ref[...], x, preferred_element_type=jnp.float32)
    acc = acc + b_ref[...]
    latent_ref[...] = acc.astype(latent_ref.dtype)
    out_ref[...] = (skip * x + acc).astype(out_ref.dtype)


# ----------------------------------------------------------------------------
# Block sizing
# ----------------------------------------------------------------------------
def _pick_row_block(r_total, n, c):
    """Rows (of 128 lanes) per block for the small-C, sublane-dense layout."""
    bytes_per_row = c * _LANE * 4
    rb = (_TARGET_BLOCK_BYTES // bytes_per_row) // _SUBLANE * _SUBLANE
    rb_cap = (_MAX_BLOCK_BYTES // bytes_per_row) // _SUBLANE * _SUBLANE
    rb = max(_SUBLANE, min(rb, rb_cap))
    if rb >= r_total:
        rb = r_total  # full-extent block (legal even if not a multiple of 8)
        # v7x has 2 TensorCores: avoid a 1-step grid when splittable.
        if n == 1 and r_total >= 2 * _SUBLANE:
            rb = _round_up(pl.cdiv(r_total, 2), _SUBLANE)
    return rb


def _pick_m_tile(m_pad, n, c):
    """Lane-dim tile for the large-C (MXU) layout."""
    bytes_per_col = c * 4
    tm = (_TARGET_BLOCK_BYTES // bytes_per_col) // _LANE * _LANE
    tm_cap = (_MAX_BLOCK_BYTES // bytes_per_col) // _LANE * _LANE
    tm = max(_LANE, min(tm, tm_cap))
    if tm >= m_pad:
        tm = m_pad
        if n == 1 and m_pad >= 2 * _LANE:
            tm = _round_up(pl.cdiv(m_pad, 2), _LANE)
    return tm


# ----------------------------------------------------------------------------
# Wrapper
# ----------------------------------------------------------------------------
def skip_module_forward(x_nchw, weight, bias, skip, *, donate_x=False):
    """Fused SkipModule forward.

    Args:
      x_nchw: (N, C, H, W) input (PyTorch layout).
      weight: (C, C) submodule 1x1-conv weight (out_ch, in_ch).
      bias:   (C,)   bias.
      skip:   python float / scalar, opt.skip.
      donate_x: if the caller can donate x's buffer, alias it to the first
        output (saves one full-size HBM allocation; traffic unchanged).

    Returns:
      (skip * x + latent, latent), both (N, C, H, W) float32.
    """
    N, C, H, W = x_nchw.shape
    M = H * W

    x_f32 = x_nchw.astype(jnp.float32)
    w = weight.astype(jnp.float32)
    b1 = bias.astype(jnp.float32)
    skip_arr = jnp.asarray([skip], dtype=jnp.float32)

    # Pure reshape (no transpose); pad the fused spatial axis up to a lane
    # multiple so blocks stay (8,128)-aligned and we never fall back to a
    # single oversized full-extent block.
    x_ncm = x_f32.reshape(N, C, M)
    M_pad = _round_up(M, _LANE)
    if M_pad != M:
        x_ncm = jnp.pad(x_ncm, ((0, 0), (0, 0), (0, M_pad - M)))

    io_aliases = {3: 0} if donate_x else {}
    cparams = pltpu.CompilerParams(
        dimension_semantics=("parallel", "parallel"),
        vmem_limit_bytes=_VMEM_LIMIT_BYTES,
    )

    if C <= _SMALL_C_MAX:
        # Sublane-dense layout: every channel is a dense (RB, 128) slab.
        r_total = M_pad // _LANE
        x_ncrl = x_ncm.reshape(N, C, r_total, _LANE)
        rb = _pick_row_block(r_total, N, C)
        # NOTE: batch rows are kept squeezed (one per grid step).  For
        # tiny-spatial / very-large-batch workloads, blocking several batch
        # rows per step would be the next lever.
        grid = (N, pl.cdiv(r_total, rb))

        out4, lat4 = pl.pallas_call(
            _skip_small_c_kernel,
            out_shape=(
                jax.ShapeDtypeStruct((N, C, r_total, _LANE), jnp.float32),
                jax.ShapeDtypeStruct((N, C, r_total, _LANE), jnp.float32),
            ),
            grid=grid,
            in_specs=[
                pl.BlockSpec(memory_space=pltpu.MemorySpace.SMEM),  # skip
                pl.BlockSpec(memory_space=pltpu.MemorySpace.SMEM),  # weight (C*C,)
                pl.BlockSpec(memory_space=pltpu.MemorySpace.SMEM),  # bias   (C,)
                pl.BlockSpec((None, C, rb, _LANE), lambda n, r: (n, 0, r, 0)),
            ],
            out_specs=(
                pl.BlockSpec((None, C, rb, _LANE), lambda n, r: (n, 0, r, 0)),
                pl.BlockSpec((None, C, rb, _LANE), lambda n, r: (n, 0, r, 0)),
            ),
            compiler_params=cparams,
            input_output_aliases=io_aliases,
        )(skip_arr, w.reshape(-1), b1, x_ncrl)

        out_ncm = out4.reshape(N, C, M_pad)
        lat_ncm = lat4.reshape(N, C, M_pad)
    else:
        # Large C: contraction is worth the MXU; C fills the sublanes anyway.
        tm = _pick_m_tile(M_pad, N, C)
        grid = (N, pl.cdiv(M_pad, tm))
        b2 = b1.reshape(C, 1)

        out_ncm, lat_ncm = pl.pallas_call(
            _skip_large_c_kernel,
            out_shape=(
                jax.ShapeDtypeStruct((N, C, M_pad), jnp.float32),
                jax.ShapeDtypeStruct((N, C, M_pad), jnp.float32),
            ),
            grid=grid,
            in_specs=[
                pl.BlockSpec(memory_space=pltpu.MemorySpace.SMEM),  # skip
                pl.BlockSpec((C, C), lambda n, m: (0, 0)),          # weight
                pl.BlockSpec((C, 1), lambda n, m: (0, 0)),          # bias
                pl.BlockSpec((None, C, tm), lambda n, m: (n, 0, m)),
            ],
            out_specs=(
                pl.BlockSpec((None, C, tm), lambda n, m: (n, 0, m)),
                pl.BlockSpec((None, C, tm), lambda n, m: (n, 0, m)),
            ),
            compiler_params=cparams,
            input_output_aliases=io_aliases,
        )(skip_arr, w, b2, x_ncm)

    if M_pad != M:
        out_ncm = out_ncm[:, :, :M]
        lat_ncm = lat_ncm[:, :, :M]
    return out_ncm.reshape(N, C, H, W), lat_ncm.reshape(N, C, H, W)


if __name__ == "__main__":
    key = jax.random.PRNGKey(0)
    kx, kw, kb = jax.random.split(key, 3)

    N, C, H, W = 2, 4, 16, 16
    skip = 0.8  # opt.skip

    x = jax.random.normal(kx, (N, C, H, W), dtype=jnp.float32)
    weight = jax.random.normal(kw, (C, C), dtype=jnp.float32) * 0.1  # Conv2d(C, C, 1) weight
    bias = jax.random.normal(kb, (C,), dtype=jnp.float32) * 0.1

    out, latent = skip_module_forward(x, weight, bias, skip)
    jax.block_until_ready((out, latent))

    # Pure-JAX reference (same math as the PyTorch module).
    x_rows = x.reshape(N, C, H * W)
    latent_ref = jnp.einsum("oi,nim->nom", weight, x_rows).reshape(N, C, H, W)
    latent_ref = latent_ref + bias[None, :, None, None]
    out_ref = skip * x + latent_ref

    assert jnp.allclose(latent, latent_ref, atol=1e-5), "latent mismatch"
    assert jnp.allclose(out, out_ref, atol=1e-5), "skip output mismatch"
    print("KERNEL_OK")
</pallas_src>

<mosaic_0001>
module attributes {stable_mosaic.version = 11 : i64} {
  func.func @_skip_small_c_kernel(%arg0: i32, %arg1: i32, %arg2: memref<1xf32, #tpu.memory_space<smem>>, %arg3: memref<16xf32, #tpu.memory_space<smem>>, %arg4: memref<4xf32, #tpu.memory_space<smem>>, %arg5: memref<1x4x2x128xf32, #tpu.memory_space<vmem>>, %arg6: memref<1x4x2x128xf32, #tpu.memory_space<vmem>>, %arg7: memref<1x4x2x128xf32, #tpu.memory_space<vmem>>) attributes {dimension_semantics = [#tpu.dimension_semantics<parallel>, #tpu.dimension_semantics<parallel>], iteration_bounds = array<i64: 2, 1>, scalar_prefetch = 0 : i64, scratch_operands = 0 : i64, tpu.core_type = #tpu.core_type<tc>, window_params = [{transform_indices = @transform_0, window_bounds = array<i64: 1>}, {transform_indices = @transform_1, window_bounds = array<i64: 16>}, {transform_indices = @transform_2, window_bounds = array<i64: 4>}, {transform_indices = @transform_3, window_bounds = array<i64: 1, 4, 2, 128>}, {transform_indices = @transform_4, window_bounds = array<i64: 1, 4, 2, 128>}, {transform_indices = @transform_5, window_bounds = array<i64: 1, 4, 2, 128>}]} {
    %c0 = arith.constant 0 : index
    %0 = memref.load %arg2[%c0] : memref<1xf32, #tpu.memory_space<smem>>
    %c0_0 = arith.constant 0 : index
    %c0_1 = arith.constant 0 : index
    %c0_2 = arith.constant 0 : index
    %c0_3 = arith.constant 0 : index
    %1 = vector.load %arg5[%c0_0, %c0_1, %c0_2, %c0_3] : memref<1x4x2x128xf32, #tpu.memory_space<vmem>>, vector<1x1x2x128xf32>
    %2 = vector.shape_cast %1 : vector<1x1x2x128xf32> to vector<2x128xf32>
    %c0_4 = arith.constant 0 : index
    %c1 = arith.constant 1 : index
    %c0_5 = arith.constant 0 : index
    %c0_6 = arith.constant 0 : index
    %3 = vector.load %arg5[%c0_4, %c1, %c0_5, %c0_6] : memref<1x4x2x128xf32, #tpu.memory_space<vmem>>, vector<1x1x2x128xf32>
    %4 = vector.shape_cast %3 : vector<1x1x2x128xf32> to vector<2x128xf32>
    %c0_7 = arith.constant 0 : index
    %c2 = arith.constant 2 : index
    %c0_8 = arith.constant 0 : index
    %c0_9 = arith.constant 0 : index
    %5 = vector.load %arg5[%c0_7, %c2, %c0_8, %c0_9] : memref<1x4x2x128xf32, #tpu.memory_space<vmem>>, vector<1x1x2x128xf32>
    %6 = vector.shape_cast %5 : vector<1x1x2x128xf32> to vector<2x128xf32>
    %c0_10 = arith.constant 0 : index
    %c3 = arith.constant 3 : index
    %c0_11 = arith.constant 0 : index
    %c0_12 = arith.constant 0 : index
    %7 = vector.load %arg5[%c0_10, %c3, %c0_11, %c0_12] : memref<1x4x2x128xf32, #tpu.memory_space<vmem>>, vector<1x1x2x128xf32>
    %8 = vector.shape_cast %7 : vector<1x1x2x128xf32> to vector<2x128xf32>
    %c0_13 = arith.constant 0 : index
    %9 = memref.load %arg3[%c0_13] : memref<16xf32, #tpu.memory_space<smem>>
    %10 = vector.broadcast %9 : f32 to vector<2x128xf32>
    %11 = arith.mulf %2, %10 : vector<2x128xf32>
    %c1_14 = arith.constant 1 : index
    %12 = memref.load %arg3[%c1_14] : memref<16xf32, #tpu.memory_space<smem>>
    %13 = vector.broadcast %12 : f32 to vector<2x128xf32>
    %14 = arith.mulf %4, %13 : vector<2x128xf32>
    %15 = arith.addf %11, %14 : vector<2x128xf32>
    %c2_15 = arith.constant 2 : index
    %16 = memref.load %arg3[%c2_15] : memref<16xf32, #tpu.memory_space<smem>>
    %17 = vector.broadcast %16 : f32 to vector<2x128xf32>
    %18 = arith.mulf %6, %17 : vector<2x128xf32>
    %19 = arith.addf %15, %18 : vector<2x128xf32>
    %c3_16 = arith.constant 3 : index
    %20 = memref.load %arg3[%c3_16] : memref<16xf32, #tpu.memory_space<smem>>
    %21 = vector.broadcast %20 : f32 to vector<2x128xf32>
    %22 = arith.mulf %8, %21 : vector<2x128xf32>
    %23 = arith.addf %19, %22 : vector<2x128xf32>
    %c0_17 = arith.constant 0 : index
    %24 = memref.load %arg4[%c0_17] : memref<4xf32, #tpu.memory_space<smem>>
    %25 = vector.broadcast %24 : f32 to vector<2x128xf32>
    %26 = arith.addf %23, %25 : vector<2x128xf32>
    %c0_18 = arith.constant 0 : index
    %c0_19 = arith.constant 0 : index
    %c0_20 = arith.constant 0 : index
    %c0_21 = arith.constant 0 : index
    %27 = vector.load %arg7[%c0_18, %c0_19, %c0_20, %c0_21] : memref<1x4x2x128xf32, #tpu.memory_space<vmem>>, vector<1x1x2x128xf32>
    %28 = vector.shape_cast %27 : vector<1x1x2x128xf32> to vector<2x128xf32>
    %29 = vector.shape_cast %26 : vector<2x128xf32> to vector<1x1x2x128xf32>
    tpu.vector_store %arg7[%c0_18, %c0_19, %c0_20, %c0_21], %29 {strides = array<i32>} : memref<1x4x2x128xf32, #tpu.memory_space<vmem>>, vector<1x1x2x128xf32>,
    %30 = vector.broadcast %0 : f32 to vector<2x128xf32>
    %31 = arith.mulf %30, %2 : vector<2x128xf32>
    %32 = arith.addf %31, %26 : vector<2x128xf32>
    %c0_22 = arith.constant 0 : index
    %c0_23 = arith.constant 0 : index
    %c0_24 = arith.constant 0 : index
    %c0_25 = arith.constant 0 : index
    %33 = vector.load %arg6[%c0_22, %c0_23, %c0_24, %c0_25] : memref<1x4x2x128xf32, #tpu.memory_space<vmem>>, vector<1x1x2x128xf32>
    %34 = vector.shape_cast %33 : vector<1x1x2x128xf32> to vector<2x128xf32>
    %35 = vector.shape_cast %32 : vector<2x128xf32> to vector<1x1x2x128xf32>
    tpu.vector_store %arg6[%c0_22, %c0_23, %c0_24, %c0_25], %35 {strides = array<i32>} : memref<1x4x2x128xf32, #tpu.memory_space<vmem>>, vector<1x1x2x128xf32>,
    %c4 = arith.constant 4 : index
    %36 = memref.load %arg3[%c4] : memref<16xf32, #tpu.memory_space<smem>>
    %37 = vector.broadcast %36 : f32 to vector<2x128xf32>
    %38 = arith.mulf %2, %37 : vector<2x128xf32>
    %c5 = arith.constant 5 : index
    %39 = memref.load %arg3[%c5] : memref<16xf32, #tpu.memory_space<smem>>
    %40 = vector.broadcast %39 : f32 to vector<2x128xf32>
    %41 = arith.mulf %4, %40 : vector<2x128xf32>
    %42 = arith.addf %38, %41 : vector<2x128xf32>
    %c6 = arith.constant 6 : index
    %43 = memref.load %arg3[%c6] : memref<16xf32, #tpu.memory_space<smem>>
    %44 = vector.broadcast %43 : f32 to vector<2x128xf32>
    %45 = arith.mulf %6, %44 : vector<2x128xf32>
    %46 = arith.addf %42, %45 : vector<2x128xf32>
    %c7 = arith.constant 7 : index
    %47 = memref.load %arg3[%c7] : memref<16xf32, #tpu.memory_space<smem>>
    %48 = vector.broadcast %47 : f32 to vector<2x128xf32>
    %49 = arith.mulf %8, %48 : vector<2x128xf32>
    %50 = arith.addf %46, %49 : vector<2x128xf32>
    %c1_26 = arith.constant 1 : index
    %51 = memref.load %arg4[%c1_26] : memref<4xf32, #tpu.memory_space<smem>>
    %52 = vector.broadcast %51 : f32 to vector<2x128xf32>
    %53 = arith.addf %50, %52 : vector<2x128xf32>
    %c0_27 = arith.constant 0 : index
    %c1_28 = arith.constant 1 : index
    %c0_29 = arith.constant 0 : index
    %c0_30 = arith.constant 0 : index
    %54 = vector.load %arg7[%c0_27, %c1_28, %c0_29, %c0_30] : memref<1x4x2x128xf32, #tpu.memory_space<vmem>>, vector<1x1x2x128xf32>
    %55 = vector.shape_cast %54 : vector<1x1x2x128xf32> to vector<2x128xf32>
    %56 = vector.shape_cast %53 : vector<2x128xf32> to vector<1x1x2x128xf32>
    tpu.vector_store %arg7[%c0_27, %c1_28, %c0_29, %c0_30], %56 {strides = array<i32>} : memref<1x4x2x128xf32, #tpu.memory_space<vmem>>, vector<1x1x2x128xf32>,
    %57 = vector.broadcast %0 : f32 to vector<2x128xf32>
    %58 = arith.mulf %57, %4 : vector<2x128xf32>
    %59 = arith.addf %58, %53 : vector<2x128xf32>
    %c0_31 = arith.constant 0 : index
    %c1_32 = arith.constant 1 : index
    %c0_33 = arith.constant 0 : index
    %c0_34 = arith.constant 0 : index
    %60 = vector.load %arg6[%c0_31, %c1_32, %c0_33, %c0_34] : memref<1x4x2x128xf32, #tpu.memory_space<vmem>>, vector<1x1x2x128xf32>
    %61 = vector.shape_cast %60 : vector<1x1x2x128xf32> to vector<2x128xf32>
    %62 = vector.shape_cast %59 : vector<2x128xf32> to vector<1x1x2x128xf32>
    tpu.vector_store %arg6[%c0_31, %c1_32, %c0_33, %c0_34], %62 {strides = array<i32>} : memref<1x4x2x128xf32, #tpu.memory_space<vmem>>, vector<1x1x2x128xf32>,
    %c8 = arith.constant 8 : index
    %63 = memref.load %arg3[%c8] : memref<16xf32, #tpu.memory_space<smem>>
    %64 = vector.broadcast %63 : f32 to vector<2x128xf32>
    %65 = arith.mulf %2, %64 : vector<2x128xf32>
    %c9 = arith.constant 9 : index
    %66 = memref.load %arg3[%c9] : memref<16xf32, #tpu.memory_space<smem>>
    %67 = vector.broadcast %66 : f32 to vector<2x128xf32>
    %68 = arith.mulf %4, %67 : vector<2x128xf32>
    %69 = arith.addf %65, %68 : vector<2x128xf32>
    %c10 = arith.constant 10 : index
    %70 = memref.load %arg3[%c10] : memref<16xf32, #tpu.memory_space<smem>>
    %71 = vector.broadcast %70 : f32 to vector<2x128xf32>
    %72 = arith.mulf %6, %71 : vector<2x128xf32>
    %73 = arith.addf %69, %72 : vector<2x128xf32>
    %c11 = arith.constant 11 : index
    %74 = memref.load %arg3[%c11] : memref<16xf32, #tpu.memory_space<smem>>
    %75 = vector.broadcast %74 : f32 to vector<2x128xf32>
    %76 = arith.mulf %8, %75 : vector<2x128xf32>
    %77 = arith.addf %73, %76 : vector<2x128xf32>
    %c2_35 = arith.constant 2 : index
    %78 = memref.load %arg4[%c2_35] : memref<4xf32, #tpu.memory_space<smem>>
    %79 = vector.broadcast %78 : f32 to vector<2x128xf32>
    %80 = arith.addf %77, %79 : vector<2x128xf32>
    %c0_36 = arith.constant 0 : index
    %c2_37 = arith.constant 2 : index
    %c0_38 = arith.constant 0 : index
    %c0_39 = arith.constant 0 : index
    %81 = vector.load %arg7[%c0_36, %c2_37, %c0_38, %c0_39] : memref<1x4x2x128xf32, #tpu.memory_space<vmem>>, vector<1x1x2x128xf32>
    %82 = vector.shape_cast %81 : vector<1x1x2x128xf32> to vector<2x128xf32>
    %83 = vector.shape_cast %80 : vector<2x128xf32> to vector<1x1x2x128xf32>
    tpu.vector_store %arg7[%c0_36, %c2_37, %c0_38, %c0_39], %83 {strides = array<i32>} : memref<1x4x2x128xf32, #tpu.memory_space<vmem>>, vector<1x1x2x128xf32>,
    %84 = vector.broadcast %0 : f32 to vector<2x128xf32>
    %85 = arith.mulf %84, %6 : vector<2x128xf32>
    %86 = arith.addf %85, %80 : vector<2x128xf32>
    %c0_40 = arith.constant 0 : index
    %c2_41 = arith.constant 2 : index
    %c0_42 = arith.constant 0 : index
    %c0_43 = arith.constant 0 : index
    %87 = vector.load %arg6[%c0_40, %c2_41, %c0_42, %c0_43] : memref<1x4x2x128xf32, #tpu.memory_space<vmem>>, vector<1x1x2x128xf32>
    %88 = vector.shape_cast %87 : vector<1x1x2x128xf32> to vector<2x128xf32>
    %89 = vector.shape_cast %86 : vector<2x128xf32> to vector<1x1x2x128xf32>
    tpu.vector_store %arg6[%c0_40, %c2_41, %c0_42, %c0_43], %89 {strides = array<i32>} : memref<1x4x2x128xf32, #tpu.memory_space<vmem>>, vector<1x1x2x128xf32>,
    %c12 = arith.constant 12 : index
    %90 = memref.load %arg3[%c12] : memref<16xf32, #tpu.memory_space<smem>>
    %91 = vector.broadcast %90 : f32 to vector<2x128xf32>
    %92 = arith.mulf %2, %91 : vector<2x128xf32>
    %c13 = arith.constant 13 : index
    %93 = memref.load %arg3[%c13] : memref<16xf32, #tpu.memory_space<smem>>
    %94 = vector.broadcast %93 : f32 to vector<2x128xf32>
    %95 = arith.mulf %4, %94 : vector<2x128xf32>
    %96 = arith.addf %92, %95 : vector<2x128xf32>
    %c14 = arith.constant 14 : index
    %97 = memref.load %arg3[%c14] : memref<16xf32, #tpu.memory_space<smem>>
    %98 = vector.broadcast %97 : f32 to vector<2x128xf32>
    %99 = arith.mulf %6, %98 : vector<2x128xf32>
    %100 = arith.addf %96, %99 : vector<2x128xf32>
    %c15 = arith.constant 15 : index
    %101 = memref.load %arg3[%c15] : memref<16xf32, #tpu.memory_space<smem>>
    %102 = vector.broadcast %101 : f32 to vector<2x128xf32>
    %103 = arith.mulf %8, %102 : vector<2x128xf32>
    %104 = arith.addf %100, %103 : vector<2x128xf32>
    %c3_44 = arith.constant 3 : index
    %105 = memref.load %arg4[%c3_44] : memref<4xf32, #tpu.memory_space<smem>>
    %106 = vector.broadcast %105 : f32 to vector<2x128xf32>
    %107 = arith.addf %104, %106 : vector<2x128xf32>
    %c0_45 = arith.constant 0 : index
    %c3_46 = arith.constant 3 : index
    %c0_47 = arith.constant 0 : index
    %c0_48 = arith.constant 0 : index
    %108 = vector.load %arg7[%c0_45, %c3_46, %c0_47, %c0_48] : memref<1x4x2x128xf32, #tpu.memory_space<vmem>>, vector<1x1x2x128xf32>
    %109 = vector.shape_cast %108 : vector<1x1x2x128xf32> to vector<2x128xf32>
    %110 = vector.shape_cast %107 : vector<2x128xf32> to vector<1x1x2x128xf32>
    tpu.vector_store %arg7[%c0_45, %c3_46, %c0_47, %c0_48], %110 {strides = array<i32>} : memref<1x4x2x128xf32, #tpu.memory_space<vmem>>, vector<1x1x2x128xf32>,
    %111 = vector.broadcast %0 : f32 to vector<2x128xf32>
    %112 = arith.mulf %111, %8 : vector<2x128xf32>
    %113 = arith.addf %112, %107 : vector<2x128xf32>
    %c0_49 = arith.constant 0 : index
    %c3_50 = arith.constant 3 : index
    %c0_51 = arith.constant 0 : index
    %c0_52 = arith.constant 0 : index
    %114 = vector.load %arg6[%c0_49, %c3_50, %c0_51, %c0_52] : memref<1x4x2x128xf32, #tpu.memory_space<vmem>>, vector<1x1x2x128xf32>
    %115 = vector.shape_cast %114 : vector<1x1x2x128xf32> to vector<2x128xf32>
    %116 = vector.shape_cast %113 : vector<2x128xf32> to vector<1x1x2x128xf32>
    tpu.vector_store %arg6[%c0_49, %c3_50, %c0_51, %c0_52], %116 {strides = array<i32>} : memref<1x4x2x128xf32, #tpu.memory_space<vmem>>, vector<1x1x2x128xf32>,
    return
  }
  func.func @transform_0(%arg0: i32, %arg1: i32) -> i32 {
    %c0_i32 = arith.constant 0 : i32
    %c0_i32_0 = arith.constant 0 : i32
    return %c0_i32 : i32
  }
  func.func @transform_1(%arg0: i32, %arg1: i32) -> i32 {
    %c0_i32 = arith.constant 0 : i32
    %c0_i32_0 = arith.constant 0 : i32
    return %c0_i32 : i32
  }
  func.func @transform_2(%arg0: i32, %arg1: i32) -> i32 {
    %c0_i32 = arith.constant 0 : i32
    %c0_i32_0 = arith.constant 0 : i32
    return %c0_i32 : i32
  }
  func.func @transform_3(%arg0: i32, %arg1: i32) -> (i32, i32, i32, i32) {
    %c0_i32 = arith.constant 0 : i32
    %c0_i32_0 = arith.constant 0 : i32
    %c0_i32_1 = arith.constant 0 : i32
    return %arg0, %c0_i32, %arg1, %c0_i32_0 : i32, i32, i32, i32
  }
  func.func @transform_4(%arg0: i32, %arg1: i32) -> (i32, i32, i32, i32) {
    %c0_i32 = arith.constant 0 : i32
    %c0_i32_0 = arith.constant 0 : i32
    %c0_i32_1 = arith.constant 0 : i32
    return %arg0, %c0_i32, %arg1, %c0_i32_0 : i32, i32, i32, i32
  }
  func.func @transform_5(%arg0: i32, %arg1: i32) -> (i32, i32, i32, i32) {
    %c0_i32 = arith.constant 0 : i32
    %c0_i32_0 = arith.constant 0 : i32
    %c0_i32_1 = arith.constant 0 : i32
    return %arg0, %c0_i32, %arg1, %c0_i32_0 : i32, i32, i32, i32
  }
}

</mosaic_0001>

<llo_original>
// kernel: tpu_custom_call.1
$region0: #{tpu_custom_call.1}
  #allocation0 [shape = 'u32[]', space=smem, size = 0x4, offset = 0x4, fixed_abs, tag = 'smem constant byte address 0x4 - core index']
  #allocation1 [shape = 'u32[144,128]{1,0:T(1,128)}', space=vmem, size = 0x12000, scoped, tag = 'internal scratch']
  #allocation2 [shape = 'f32[1]{0:T(128)S(6)}', space=smem, size = 0x200, scoped, tag = 'scoped memory for tpu_custom_call.1']
  %s0 = inlined_call_operand.<no memory space> [shape: f32[1], index: 0, kind: input, shape index: {}]
  %s1 = inlined_call_operand.vmem [shape: f32[16], index: 1, kind: input, shape index: {}]
  %s2 = inlined_call_operand.vmem [shape: f32[4], index: 2, kind: input, shape index: {}]
  %s3 = inlined_call_operand.hbm [shape: f32[2,4,2,128], index: 3, kind: input, shape index: {}]
  %s4 = inlined_call_operand.hbm [shape: f32[2,4,2,128], index: 4, kind: output, shape index: {0}]
  %s5 = inlined_call_operand.hbm [shape: f32[2,4,2,128], index: 5, kind: output, shape index: {1}]
  %6 = xla_tuple %s4, %s5
  %s7 = sld [smem:[#allocation0]]
  $region69: #{tpu_custom_call.1} parent=0
    _
  %s9 = ssub.s32 1, %s7
  %s10 = scalar_select 0, %s9, %s7
  %11 = sst [smem:[#allocation2]] %s0
  $region1: #{tpu_custom_call.1} parent=0
    #allocation3 [shape = 'u8[512]{0}', space=smem, size = 0x200, scoped, tag = 'input window, operand 1, single buffered']
    #allocation4 [shape = 's32[2]{0}', space=sflag, size = 0x8, scoped, tag = 'scoped memory for tpu_custom_call.1']
    #allocation5 [shape = 's32[2]{0}', space=sflag, size = 0x8, scoped, tag = 'scoped memory for tpu_custom_call.1']
    #allocation6 [shape = 's32[2]{0}', space=sflag, size = 0x8, scoped, tag = 'scoped memory for tpu_custom_call.1']
    #allocation7 [shape = 'u8[512]{0}', space=smem, size = 0x200, scoped, tag = 'input window, operand 2, single buffered']
    #allocation8 [shape = 's32[1]{0}', space=sflag, size = 0x4, scoped, tag = 'scoped memory for tpu_custom_call.1']
    #allocation9 [shape = 'u8[8192]{0}', space=vmem, size = 0x2000, scoped, tag = 'input window, operand 3']
    #allocation10 [shape = 'u8[8192]{0}', space=vmem, size = 0x2000, scoped, tag = 'output window, operand 0']
    #allocation11 [shape = 'u8[8192]{0}', space=vmem, size = 0x2000, scoped, tag = 'output window, operand 1']
    #allocation12 [shape = 's32[2]{0}', space=sflag, size = 0x8, scoped, tag = 'scoped memory for tpu_custom_call.1']
    %12 = vsyncpa [#allocation6], 0
    %13 = vsyncpa [#allocation8], 0
    %14 = vsyncpa [#allocation4], 0
    %s15 = scalar_lea.sflag [#allocation4], 1
    %16 = vsyncpa %s15, 0
    %17 = vsyncpa [#allocation5], 0
    %s18 = scalar_lea.sflag [#allocation5], 1
    %19 = vsyncpa %s18, 0
    %20 = vsyncpa [#allocation12], 0
    %s21 = scalar_lea.sflag [#allocation12], 1
    %22 = vsyncpa %s21, 0
    loop: start=0, step=1, limit=4
    $region2: #{tpu_custom_call.1} parent=1 // loop_pre_header
      _
    $region3: #{tpu_custom_call.1} parent=1 // loop_header
      %s24 = sphi 0, %s28
      %p25 = scmp.ge.s32.totalorder %s24, 4
      %s31 = sphi 0, %s43
      %s32 = sphi 0, %s39
      %s33 = sphi 0, %s31
      %s34 = sphi 0, %s32
      %s35 = sphi 0, %s33
      %s36 = sphi 0, %s34
      %s44 = sphi 0, %s44
      %s46 = sphi 0, %s44
      %s47 = sphi 0, %s46
      %s61 = sphi 0, %s47
      %s65 = sphi 0, %s65
      %s67 = sphi 0, %s65
      %s68 = sphi 0, %s67
      %s82 = sphi 0, %s68
      %s86 = sphi 0, %s86
      %s88 = sphi 0, %s86
      %s89 = sphi 0, %s88
      %s103 = sphi 0, %s89
      %s111 = sphi 0, %s113
      %s114 = sphi 0, %s111
      %s115 = sphi 0, %s114
      %s131 = sphi 0, %s115
      %s139 = sphi 0, %s141
      %s142 = sphi 0, %s139
      %s143 = sphi 0, %s142
      %s159 = sphi 0, %s143
      %s167 = sphi 0, %s169
      %s170 = sphi 0, %s167
      %s171 = sphi 0, %s170
      %s187 = sphi 0, %s171
    $region4: #{tpu_custom_call.1} parent=1 // loop_header_branch
      %27 = sbr.rel (%p25) target = $region8
    $region5: #{tpu_custom_call.1} parent=1 // loop_body
      %s29 = ssub.s32 %s24, 1
      %s30 = ssub.s32 %s24, 2
      %s37 = sadd.s32 1, %s32
      %p38 = scmp.ge.s32.totalorder %s37, 1
      %s39 = scalar_select %p38, 0, %s37
      %s40 = sadd.s32 1, %s31
      %s41 = scalar_select %p38, %s40, %s31
      %p42 = scmp.ge.s32.totalorder %s41, 2
      %s43 = scalar_select %p42, 0, %s41
      %s45 = sadd.s32 %s44, 1
      %p48 = scmp.eq.s32.totalorder %s24, 1
      %p49 = scmp.ne.s32.totalorder %s44, %s46
      %p50 = scmp.eq.s32.totalorder %s24, 0
      %p51 = por %p49, %p50
      %p52 = scmp.ne.s32.totalorder %s44, %s46
      %p53 = scmp.eq.s32.totalorder %s29, 1
      %p54 = por %p52, %p53
      %p55 = scmp.ne.s32.totalorder %s46, %s47
      %p56 = scmp.eq.s32.totalorder %s29, 0
      %p57 = por %p55, %p56
      %p58 = scmp.ne.s32.totalorder %s46, %s47
      %p59 = scmp.eq.s32.totalorder %s30, 1
      %p60 = por %p58, %p59
      %p62 = scmp.ne.s32.totalorder %s47, %s61
      %p63 = scmp.eq.s32.totalorder %s30, 0
      %p64 = por %p62, %p63
      %s66 = sadd.s32 %s65, 1
      %p69 = scmp.eq.s32.totalorder %s24, 1
      %p70 = scmp.ne.s32.totalorder %s65, %s67
      %p71 = scmp.eq.s32.totalorder %s24, 0
      %p72 = por %p70, %p71
      %p73 = scmp.ne.s32.totalorder %s65, %s67
      %p74 = scmp.eq.s32.totalorder %s29, 1
      %p75 = por %p73, %p74
      %p76 = scmp.ne.s32.totalorder %s67, %s68
      %p77 = scmp.eq.s32.totalorder %s29, 0
      %p78 = por %p76, %p77
      %p79 = scmp.ne.s32.totalorder %s67, %s68
      %p80 = scmp.eq.s32.totalorder %s30, 1
      %p81 = por %p79, %p80
      %p83 = scmp.ne.s32.totalorder %s68, %s82
      %p84 = scmp.eq.s32.totalorder %s30, 0
      %p85 = por %p83, %p84
      %s87 = sadd.s32 %s86, 1
      %p90 = scmp.eq.s32.totalorder %s24, 1
      %p91 = scmp.ne.s32.totalorder %s86, %s88
      %p92 = scmp.eq.s32.totalorder %s24, 0
      %p93 = por %p91, %p92
      %p94 = scmp.ne.s32.totalorder %s86, %s88
      %p95 = scmp.eq.s32.totalorder %s29, 1
      %p96 = por %p94, %p95
      %p97 = scmp.ne.s32.totalorder %s88, %s89
      %p98 = scmp.eq.s32.totalorder %s29, 0
      %p99 = por %p97, %p98
      %p100 = scmp.ne.s32.totalorder %s88, %s89
      %p101 = scmp.eq.s32.totalorder %s30, 1
      %p102 = por %p100, %p101
      %p104 = scmp.ne.s32.totalorder %s89, %s103
      %p105 = scmp.eq.s32.totalorder %s30, 0
      %p106 = por %p104, %p105
      %s107 = ssub.s32 %s31, %s43
      %s108 = ssub.s32 %s32, %s39
      %s109 = sor.u32 %s107, %s108
      %p110 = scmp.eq.s32.totalorder %s109, 0
      %s112 = sadd.s32 %s111, 1
      %s113 = scalar_select %p110, %s111, %s112
      %p116 = pneg %p110
      %p117 = scmp.eq.s32.totalorder %s24, 1
      %p118 = por %p116, %p117
      %p119 = scmp.ne.s32.totalorder %s111, %s114
      %p120 = scmp.eq.s32.totalorder %s24, 0
      %p121 = por %p119, %p120
      %p122 = scmp.ne.s32.totalorder %s111, %s114
      %p123 = scmp.eq.s32.totalorder %s29, 1
      %p124 = por %p122, %p123
      %p125 = scmp.ne.s32.totalorder %s114, %s115
      %p126 = scmp.eq.s32.totalorder %s29, 0
      %p127 = por %p125, %p126
      %p128 = scmp.ne.s32.totalorder %s114, %s115
      %p129 = scmp.eq.s32.totalorder %s30, 1
      %p130 = por %p128, %p129
      %p132 = scmp.ne.s32.totalorder %s115, %s131
      %p133 = scmp.eq.s32.totalorder %s30, 0
      %p134 = por %p132, %p133
      %s135 = ssub.s32 %s31, %s43
      %s136 = ssub.s32 %s32, %s39
      %s137 = sor.u32 %s135, %s136
      %p138 = scmp.eq.s32.totalorder %s137, 0
      %s140 = sadd.s32 %s139, 1
      %s141 = scalar_select %p138, %s139, %s140
      %p144 = pneg %p138
      %p145 = scmp.eq.s32.totalorder %s24, 1
      %p146 = por %p144, %p145
      %p147 = scmp.ne.s32.totalorder %s139, %s142
      %p148 = scmp.eq.s32.totalorder %s24, 0
      %p149 = por %p147, %p148
      %p150 = scmp.ne.s32.totalorder %s139, %s142
      %p151 = scmp.eq.s32.totalorder %s29, 1
      %p152 = por %p150, %p151
      %p153 = scmp.ne.s32.totalorder %s142, %s143
      %p154 = scmp.eq.s32.totalorder %s29, 0
      %p155 = por %p153, %p154
      %p156 = scmp.ne.s32.totalorder %s142, %s143
      %p157 = scmp.eq.s32.totalorder %s30, 1
      %p158 = por %p156, %p157
      %p160 = scmp.ne.s32.totalorder %s143, %s159
      %p161 = scmp.eq.s32.totalorder %s30, 0
      %p162 = por %p160, %p161
      %s163 = ssub.s32 %s31, %s43
      %s164 = ssub.s32 %s32, %s39
      %s165 = sor.u32 %s163, %s164
      %p166 = scmp.eq.s32.totalorder %s165, 0
      %s168 = sadd.s32 %s167, 1
      %s169 = scalar_select %p166, %s167, %s168
      %p172 = pneg %p166
      %p173 = scmp.eq.s32.totalorder %s24, 1
      %p174 = por %p172, %p173
      %p175 = scmp.ne.s32.totalorder %s167, %s170
      %p176 = scmp.eq.s32.totalorder %s24, 0
      %p177 = por %p175, %p176
      %p178 = scmp.ne.s32.totalorder %s167, %s170
      %p179 = scmp.eq.s32.totalorder %s29, 1
      %p180 = por %p178, %p179
      %p181 = scmp.ne.s32.totalorder %s170, %s171
      %p182 = scmp.eq.s32.totalorder %s29, 0
      %p183 = por %p181, %p182
      %p184 = scmp.ne.s32.totalorder %s170, %s171
      %p185 = scmp.eq.s32.totalorder %s30, 1
      %p186 = por %p184, %p185
      %p188 = scmp.ne.s32.totalorder %s171, %s187
      %p189 = scmp.eq.s32.totalorder %s30, 0
      %p190 = por %p188, %p189
      %p191 = scmp.le.s32.totalorder 1, %s24
      %p192 = scmp.lt.s32.totalorder %s24, 3
      %p193 = pnand %p191, %p192
      %p194 = pneg %p193
      // Predicated region
      $region9: #{tpu_custom_call.1} parent=5 // pred_check
        _
      $region10: #{tpu_custom_call.1} parent=5 // pred_check_branch
        %196 = sbr.rel (%p193) target = $region12
      $region11: #{tpu_custom_call.1} parent=5 // pred_region
        %s197 = ssub.s32 %s24, 1
        // Predicated region
        $region13: #{tpu_custom_call.1} parent=11 // pred_check
          %p198 = pneg %p57
        $region14: #{tpu_custom_call.1} parent=11 // pred_check_branch
          %200 = sbr.rel (%p198) target = $region16
        $region15: #{tpu_custom_call.1} parent=11 // pred_region
          _
        $region16: #{tpu_custom_call.1} parent=11 // pred_fallthru
          _
        // Predicated region
        $region17: #{tpu_custom_call.1} parent=11 // pred_check
          %p201 = pneg %p78
        $region18: #{tpu_custom_call.1} parent=11 // pred_check_branch
          %203 = sbr.rel (%p201) target = $region20
        $region19: #{tpu_custom_call.1} parent=11 // pred_region
          %s205 = ssub.s32 16, 16
          %206 = vsyncadd [#allocation6], %s205
          %s208 = sshll.u32 %s1, 4
          %s209 = int_to_ptr.vmem [resolvable:$true] %s208
          %211 = dma.vmem_to_smem %s209, 16, [#allocation3], [#allocation6]
        $region20: #{tpu_custom_call.1} parent=11 // pred_fallthru
          _
        // Predicated region
        $region21: #{tpu_custom_call.1} parent=11 // pred_check
          %p212 = pneg %p99
        $region22: #{tpu_custom_call.1} parent=11 // pred_check_branch
          %214 = sbr.rel (%p212) target = $region24
        $region23: #{tpu_custom_call.1} parent=11 // pred_region
          %s216 = ssub.s32 16, 16
          %217 = vsyncadd [#allocation8], %s216
          %s219 = sshll.u32 %s2, 4
          %s220 = int_to_ptr.vmem [resolvable:$true] %s219
          %222 = dma.vmem_to_smem %s220, 16, [#allocation7], [#allocation8]
        $region24: #{tpu_custom_call.1} parent=11 // pred_fallthru
          _
      $region12: #{tpu_custom_call.1} parent=5 // pred_fallthru
        _
      %p223 = scmp.lt.s32.totalorder %s24, 2
      // Predicated region
      $region25: #{tpu_custom_call.1} parent=5 // pred_check
        %p224 = pneg %p223
      $region26: #{tpu_custom_call.1} parent=5 // pred_check_branch
        %226 = sbr.rel (%p224) target = $region28
      $region27: #{tpu_custom_call.1} parent=5 // pred_region
        // Predicated region
        $region29: #{tpu_custom_call.1} parent=27 // pred_check
          %p227 = pneg %p121
        $region30: #{tpu_custom_call.1} parent=27 // pred_check_branch
          %229 = sbr.rel (%p227) target = $region32
        $region31: #{tpu_custom_call.1} parent=27 // pred_region
          %s230 = sand.u32 %s111, 1
          %s231 = scalar_lea.sflag [#allocation4], %s230
          %s232 = sand.u32 %s111, 1
          %s233 = smul.addr %s232, 8
          %s234 = scalar_lea.vmem [#allocation9], %s233
          %s236 = ssub.s32 128, 128
          %237 = vsyncadd %s231, %s236
          %s238 = smul.addr %s31, 4
          %s239 = sadd.s32 %s32, %s238
          %s240 = smul.addr %s239, 32
          %s241 = scalar_lea.hbm %s3, %s240
          %s242 = sshll.u32 %s234, 4
          %s243 = int_to_ptr.vmem [resolvable:$true] %s242
          %248 = dma.hbm_to_vmem [thread:$0]  %s241, 128, %s243, %s231, 32, 32, 2
        $region32: #{tpu_custom_call.1} parent=27 // pred_fallthru
          _
      $region28: #{tpu_custom_call.1} parent=5 // pred_fallthru
        _
      %p249 = scmp.le.s32.totalorder 1, %s24
      %p250 = scmp.lt.s32.totalorder %s24, 3
      %p251 = pnand %p249, %p250
      %p252 = pneg %p251
      // Predicated region
      $region33: #{tpu_custom_call.1} parent=5 // pred_check
        _
      $region34: #{tpu_custom_call.1} parent=5 // pred_check_branch
        %254 = sbr.rel (%p251) target = $region36
      $region35: #{tpu_custom_call.1} parent=5 // pred_region
        %s255 = ssub.s32 %s24, 1
        // Predicated region
        $region37: #{tpu_custom_call.1} parent=35 // pred_check
          %p256 = pneg %p78
        $region38: #{tpu_custom_call.1} parent=35 // pred_check_branch
          %258 = sbr.rel (%p256) target = $region40
        $region39: #{tpu_custom_call.1} parent=35 // pred_region
          %259 = dma.done [#allocation6], 16
        $region40: #{tpu_custom_call.1} parent=35 // pred_fallthru
          _
        // Predicated region
        $region41: #{tpu_custom_call.1} parent=35 // pred_check
          %p260 = pneg %p99
        $region42: #{tpu_custom_call.1} parent=35 // pred_check_branch
          %262 = sbr.rel (%p260) target = $region44
        $region43: #{tpu_custom_call.1} parent=35 // pred_region
          %263 = dma.done [#allocation8], 16
        $region44: #{tpu_custom_call.1} parent=35 // pred_fallthru
          _
        %s264 = sand.u32 %s114, 1
        %s265 = scalar_lea.sflag [#allocation4], %s264
        %s266 = sand.u32 %s114, 1
        %s267 = smul.addr %s266, 8
        %s268 = scalar_lea.vmem [#allocation9], %s267
        // Predicated region
        $region45: #{tpu_custom_call.1} parent=35 // pred_check
          %p269 = pneg %p127
        $region46: #{tpu_custom_call.1} parent=35 // pred_check_branch
          %271 = sbr.rel (%p269) target = $region48
        $region47: #{tpu_custom_call.1} parent=35 // pred_region
          %272 = dma.done %s265, 128
        $region48: #{tpu_custom_call.1} parent=35 // pred_fallthru
          _
        %273 = sfence
        %p274 = pneg %p57
        %p275 = pneg %p54
        %p276 = pneg %p78
        %p277 = pneg %p75
        %p278 = pneg %p99
        %p279 = pneg %p96
        %s280 = sand.u32 %s114, 1
        %s281 = scalar_lea.sflag [#allocation4], %s280
        %s282 = sand.u32 %s114, 1
        %s283 = smul.addr %s282, 8
        %s284 = scalar_lea.vmem [#allocation9], %s283
        %p285 = pneg %p127
        %p286 = pneg %p124
        %p287 = pneg %p155
        %p288 = pneg %p152
        %s289 = sand.u32 %s142, 1
        %s290 = scalar_lea.sflag [#allocation5], %s289
        %s291 = sand.u32 %s142, 1
        %s292 = smul.addr %s291, 8
        %s293 = scalar_lea.vmem [#allocation10], %s292
        %p294 = pneg %p183
        %p295 = pneg %p180
        %s296 = sand.u32 %s170, 1
        %s297 = scalar_lea.sflag [#allocation12], %s296
        %s298 = sand.u32 %s170, 1
        %s299 = smul.addr %s298, 8
        %s300 = scalar_lea.vmem [#allocation11], %s299
        %s301 = sld [smem:[#allocation2]]
        %v302 = vld [vmem:[%s268] sm:$0x3]
        %s303 = scalar_lea.vmem %s268, 2 [#allocation9]
        %v304 = vld [vmem:[%s303] sm:$0x3]
        %s305 = scalar_lea.vmem %s268, 4 [#allocation9]
        %v306 = vld [vmem:[%s305] sm:$0x3]
        %s307 = scalar_lea.vmem %s268, 6 [#allocation9]
        %v308 = vld [vmem:[%s307] sm:$0x3]
        %s309 = sld [smem:[#allocation3]]
        %v310 = vstv %s309
        %v311 = vmul.f32 %v302, %v310
        %s312 = sld [smem:[#allocation3 + $0x1]]
        %v313 = vstv %s312
        %v314 = vmul.f32 %v304, %v313
        %v315 = vadd.f32 %v311, %v314
        %s316 = sld [smem:[#allocation3 + $0x2]]
        %v317 = vstv %s316
        %v318 = vmul.f32 %v306, %v317
        %v319 = vadd.f32 %v315, %v318
        %s320 = sld [smem:[#allocation3 + $0x3]]
        %v321 = vstv %s320
        %v322 = vmul.f32 %v308, %v321
        %v323 = vadd.f32 %v319, %v322
        %s324 = sld [smem:[#allocation7]]
        %v325 = vstv %s324
        %v326 = vadd.f32 %v323, %v325
        %327 = vst [vmem:[%s300] sm:$0x3] %v326
        %v328 = vstv %s301
        %v329 = vmul.f32 %v328, %v302
        %v330 = vadd.f32 %v329, %v326
        %331 = vst [vmem:[%s293] sm:$0x3] %v330
        %s332 = sld [smem:[#allocation3 + $0x4]]
        %v333 = vstv %s332
        %v334 = vmul.f32 %v302, %v333
        %s335 = sld [smem:[#allocation3 + $0x5]]
        %v336 = vstv %s335
        %v337 = vmul.f32 %v304, %v336
        %v338 = vadd.f32 %v334, %v337
        %s339 = sld [smem:[#allocation3 + $0x6]]
        %v340 = vstv %s339
        %v341 = vmul.f32 %v306, %v340
        %v342 = vadd.f32 %v338, %v341
        %s343 = sld [smem:[#allocation3 + $0x7]]
        %v344 = vstv %s343
        %v345 = vmul.f32 %v308, %v344
        %v346 = vadd.f32 %v342, %v345
        %s347 = sld [smem:[#allocation7 + $0x1]]
        %v348 = vstv %s347
        %v349 = vadd.f32 %v346, %v348
        %s350 = scalar_lea.vmem %s300, 2 [#allocation11]
        %351 = vst [vmem:[%s350] sm:$0x3] %v349
        %v352 = vmul.f32 %v328, %v304
        %v353 = vadd.f32 %v352, %v349
        %s354 = scalar_lea.vmem %s293, 2 [#allocation10]
        %355 = vst [vmem:[%s354] sm:$0x3] %v353
        %s356 = sld [smem:[#allocation3 + $0x8]]
        %v357 = vstv %s356
        %v358 = vmul.f32 %v302, %v357
        %s359 = sld [smem:[#allocation3 + $0x9]]
        %v360 = vstv %s359
        %v361 = vmul.f32 %v304, %v360
        %v362 = vadd.f32 %v358, %v361
        %s363 = sld [smem:[#allocation3 + $0xa]]
        %v364 = vstv %s363
        %v365 = vmul.f32 %v306, %v364
        %v366 = vadd.f32 %v362, %v365
        %s367 = sld [smem:[#allocation3 + $0xb]]
        %v368 = vstv %s367
        %v369 = vmul.f32 %v308, %v368
        %v370 = vadd.f32 %v366, %v369
        %s371 = sld [smem:[#allocation7 + $0x2]]
        %v372 = vstv %s371
        %v373 = vadd.f32 %v370, %v372
        %s374 = scalar_lea.vmem %s300, 4 [#allocation11]
        %375 = vst [vmem:[%s374] sm:$0x3] %v373
        %v376 = vmul.f32 %v328, %v306
        %v377 = vadd.f32 %v376, %v373
        %s378 = scalar_lea.vmem %s293, 4 [#allocation10]
        %379 = vst [vmem:[%s378] sm:$0x3] %v377
        %s380 = sld [smem:[#allocation3 + $0xc]]
        %v381 = vstv %s380
        %v382 = vmul.f32 %v302, %v381
        %s383 = sld [smem:[#allocation3 + $0xd]]
        %v384 = vstv %s383
        %v385 = vmul.f32 %v304, %v384
        %v386 = vadd.f32 %v382, %v385
        %s387 = sld [smem:[#allocation3 + $0xe]]
        %v388 = vstv %s387
        %v389 = vmul.f32 %v306, %v388
        %v390 = vadd.f32 %v386, %v389
        %s391 = sld [smem:[#allocation3 + $0xf]]
        %v392 = vstv %s391
        %v393 = vmul.f32 %v308, %v392
        %v394 = vadd.f32 %v390, %v393
        %s395 = sld [smem:[#allocation7 + $0x3]]
        %v396 = vstv %s395
        %v397 = vadd.f32 %v394, %v396
        %s398 = scalar_lea.vmem %s300, 6 [#allocation11]
        %399 = vst [vmem:[%s398] sm:$0x3] %v397
        %v400 = vmul.f32 %v328, %v308
        %v401 = vadd.f32 %v400, %v397
        %s402 = scalar_lea.vmem %s293, 6 [#allocation10]
        %403 = vst [vmem:[%s402] sm:$0x3] %v401
        %s404 = sand.u32 %s142, 1
        %s405 = scalar_lea.sflag [#allocation5], %s404
        %s406 = sand.u32 %s142, 1
        %s407 = smul.addr %s406, 8
        %s408 = scalar_lea.vmem [#allocation10], %s407
        %s409 = sand.u32 %s170, 1
        %s410 = scalar_lea.sflag [#allocation12], %s409
        %s411 = sand.u32 %s170, 1
        %s412 = smul.addr %s411, 8
        %s413 = scalar_lea.vmem [#allocation11], %s412
        // Predicated region
        $region49: #{tpu_custom_call.1} parent=35 // pred_check
          %p414 = pneg %p152
        $region50: #{tpu_custom_call.1} parent=35 // pred_check_branch
          %416 = sbr.rel (%p414) target = $region52
        $region51: #{tpu_custom_call.1} parent=35 // pred_region
          %s418 = ssub.s32 128, 128
          %419 = vsyncadd %s405, %s418
          %s420 = smul.addr %s33, 4
          %s421 = sadd.s32 %s34, %s420
          %s422 = smul.addr %s421, 32
          %s423 = scalar_lea.hbm %s4, %s422
          %s424 = sshll.u32 %s408, 4
          %s425 = int_to_ptr.vmem [resolvable:$true] %s424
          %430 = dma.vmem_to_hbm [thread:$0]  %s425, 128, %s423, %s405, 32, 32, 2
        $region52: #{tpu_custom_call.1} parent=35 // pred_fallthru
          _
        // Predicated region
        $region53: #{tpu_custom_call.1} parent=35 // pred_check
          %p431 = pneg %p180
        $region54: #{tpu_custom_call.1} parent=35 // pred_check_branch
          %433 = sbr.rel (%p431) target = $region56
        $region55: #{tpu_custom_call.1} parent=35 // pred_region
          %s435 = ssub.s32 128, 128
          %436 = vsyncadd %s410, %s435
          %s437 = smul.addr %s33, 4
          %s438 = sadd.s32 %s34, %s437
          %s439 = smul.addr %s438, 32
          %s440 = scalar_lea.hbm %s5, %s439
          %s441 = sshll.u32 %s413, 4
          %s442 = int_to_ptr.vmem [resolvable:$true] %s441
          %447 = dma.vmem_to_hbm [thread:$0]  %s442, 128, %s440, %s410, 32, 32, 2
        $region56: #{tpu_custom_call.1} parent=35 // pred_fallthru
          _
      $region36: #{tpu_custom_call.1} parent=5 // pred_fallthru
        _
      %p448 = scmp.le.s32.totalorder 2, %s24
      // Predicated region
      $region57: #{tpu_custom_call.1} parent=5 // pred_check
        %p449 = pneg %p448
      $region58: #{tpu_custom_call.1} parent=5 // pred_check_branch
        %451 = sbr.rel (%p449) target = $region60
      $region59: #{tpu_custom_call.1} parent=5 // pred_region
        %s452 = ssub.s32 %s24, 2
        // Predicated region
        $region61: #{tpu_custom_call.1} parent=59 // pred_check
          %p453 = pneg %p158
        $region62: #{tpu_custom_call.1} parent=59 // pred_check_branch
          %455 = sbr.rel (%p453) target = $region64
        $region63: #{tpu_custom_call.1} parent=59 // pred_region
          %s456 = sand.u32 %s143, 1
          %s457 = scalar_lea.sflag [#allocation5], %s456
          %s458 = sand.u32 %s143, 1
          %s459 = smul.addr %s458, 8
          %s460 = scalar_lea.vmem [#allocation10], %s459
          %461 = dma.done %s457, 128
        $region64: #{tpu_custom_call.1} parent=59 // pred_fallthru
          _
        // Predicated region
        $region65: #{tpu_custom_call.1} parent=59 // pred_check
          %p462 = pneg %p186
        $region66: #{tpu_custom_call.1} parent=59 // pred_check_branch
          %464 = sbr.rel (%p462) target = $region68
        $region67: #{tpu_custom_call.1} parent=59 // pred_region
          %s465 = sand.u32 %s171, 1
          %s466 = scalar_lea.sflag [#allocation12], %s465
          %s467 = sand.u32 %s171, 1
          %s468 = smul.addr %s467, 8
          %s469 = scalar_lea.vmem [#allocation11], %s468
          %470 = dma.done %s466, 128
        $region68: #{tpu_custom_call.1} parent=59 // pred_fallthru
          _
      $region60: #{tpu_custom_call.1} parent=5 // pred_fallthru
        _
    $region6: #{tpu_custom_call.1} parent=1 // loop_footer
      %s28 = sadd.s32 1, %s24
    $region7: #{tpu_custom_call.1} parent=1 // loop_footer_branch
      %23 = sbr.rel target = $region3
    $region8: #{tpu_custom_call.1} parent=1 // loop_exit
      _
    %471 = vsyncpa [#allocation4], 1
    %s472 = scalar_lea.sflag [#allocation4], 1
    %473 = vsyncpa %s472, 1
    %474 = vsyncpa [#allocation5], 1
    %s475 = scalar_lea.sflag [#allocation5], 1
    %476 = vsyncpa %s475, 1
    %477 = vsyncpa [#allocation12], 1
    %s478 = scalar_lea.sflag [#allocation12], 1
    %479 = vsyncpa %s478, 1
    %480 = vsyncpa [#allocation6], 1
    %s481 = scalar_lea.sflag [#allocation6], 1
    %482 = vsyncpa %s481, 1
    %483 = vsyncpa [#allocation8], 1

</llo_original>
